<compile_context>
chip_gen: v7x
topology: tpu7x:2x2x1
jax: 0.10.0
libtpu: 0.0.40
codegen_flags: <defaults>
</compile_context>

<pallas_src>
import jax
import jax.numpy as jnp
from jax.experimental import pallas as pl
from jax.experimental.pallas import tpu as pltpu

NCLS = 500  # matches `ncls` in the PyTorch spec


def _outconv_gemm_kernel(x_ref, w_ref, b_ref, o_ref):
    """One (tm, K) x (K, tn) MXU GEMM tile + bias, lane-dense store.

    x_ref: (tm, K)   im2col patches tile (K = 9*Cin)
    w_ref: (K, tn)   fused (both heads) weight tile
    b_ref: (1, tn)   bias row tile
    o_ref: (tm, tn)  output tile
    """
    acc = jnp.dot(x_ref[...], w_ref[...], preferred_element_type=jnp.float32)
    o_ref[...] = (acc + b_ref[...]).astype(o_ref.dtype)


def _round_up(v, m):
    return (v + m - 1) // m * m


def out_conv(x, w1, b1, w2, b2, k):
    """OutConv forward.

    x : (B, Cin, H, W) float32 (NCHW, as in PyTorch)
    w1: ((ncls+1)*k, Cin, 3, 3), b1: ((ncls+1)*k,)
    w2: (4*k, Cin, 3, 3),        b2: (4*k,)
    Returns [flatten_conv(oconv1(x), k), flatten_conv(oconv2(x), k)]:
      [(B, H*W*k, ncls+1), (B, H*W*k, 4)]
    """
    B, Cin, H, W = x.shape
    Cout1, Cout2 = w1.shape[0], w2.shape[0]
    Cout = Cout1 + Cout2
    K = 9 * Cin

    # ---- layout plumbing in plain JAX (no compute hoisted) -----------------
    # NCHW -> NHWC, zero pad for 3x3 SAME, then im2col: stack the 9 taps along
    # the channel (lane) dim -> (B, H, W, 9*Cin) -> (B*H*W, 9*Cin).
    x_pad = jnp.pad(jnp.transpose(x, (0, 2, 3, 1)),
                    ((0, 0), (1, 1), (1, 1), (0, 0)))
    patches = jnp.concatenate(
        [x_pad[:, dy:dy + H, dx:dx + W, :] for dy in range(3) for dx in range(3)],
        axis=-1).reshape(B * H * W, K)

    # (Cout, Cin, 3, 3) OIHW -> (ky, kx, Cin, Cout) -> (9*Cin, Cout); the row
    # ordering (tap-major, then Cin) matches the patch construction above.
    def _prep(wgt):
        return jnp.transpose(wgt, (2, 3, 1, 0)).reshape(K, wgt.shape[0])

    w_all = jnp.concatenate([_prep(w1), _prep(w2)], axis=1)      # (K, Cout)
    b_all = jnp.concatenate([b1, b2])                            # (Cout,)

    # Pad Cout to a lane-dense multiple of 128 (unmasked vector stores).
    Cout_pad = _round_up(Cout, 128)
    if Cout_pad > Cout:
        w_all = jnp.pad(w_all, ((0, 0), (0, Cout_pad - Cout)))
        b_all = jnp.pad(b_all, (0, Cout_pad - Cout))
    b_all = b_all.reshape(1, Cout_pad)

    # ---- tile selection -----------------------------------------------------
    M = B * H * W
    if M >= 256:
        tm = 256                               # fills v6e/v7x 256-wide MXU rows
    else:
        tm = _round_up(M, 8)                   # single M tile, sublane aligned
    M_pad = _round_up(M, tm)
    if M_pad > M:
        patches = jnp.pad(patches, ((0, M_pad - M), (0, 0)))

    tn = 256 if Cout_pad % 256 == 0 else 128   # ~16-vreg accumulator per tile

    # ---- real VMEM footprint ((8,128) tile padding, double buffering) ------
    itemsize = jnp.dtype(x.dtype).itemsize
    x_tile = tm * _round_up(K, 128) * itemsize
    w_tile = _round_up(K, 8) * tn * itemsize
    b_tile = 8 * tn * itemsize
    o_tile = tm * tn * itemsize
    footprint = 2 * (x_tile + w_tile + b_tile + o_tile)          # double-buffered
    vmem_limit = min(max(footprint + (1 << 20), 4 << 20), 32 << 20)

    cost = pl.CostEstimate(
        flops=2 * M_pad * K * Cout_pad,
        transcendentals=0,
        bytes_accessed=(patches.size + w_all.size + b_all.size
                        + M_pad * Cout_pad) * itemsize)

    out = pl.pallas_call(
        _outconv_gemm_kernel,
        out_shape=jax.ShapeDtypeStruct((M_pad, Cout_pad), x.dtype),
        grid_spec=pltpu.PrefetchScalarGridSpec(
            num_scalar_prefetch=0,
            grid=(M_pad // tm, Cout_pad // tn),
            in_specs=[
                pl.BlockSpec((tm, K), lambda i, j: (i, 0)),
                pl.BlockSpec((K, tn), lambda i, j: (0, j)),
                pl.BlockSpec((1, tn), lambda i, j: (0, j)),
            ],
            out_specs=pl.BlockSpec((tm, tn), lambda i, j: (i, j)),
        ),
        compiler_params=pltpu.CompilerParams(
            dimension_semantics=("parallel", "parallel"),
            vmem_limit_bytes=vmem_limit),
        cost_estimate=cost,
    )(patches, w_all, b_all)

    # Strip M/Cout padding BEFORE the flatten_conv reshape, then split heads.
    out = out[:M, :Cout].reshape(B, H * W, Cout)
    out1 = out[:, :, :Cout1].reshape(B, H * W * k, Cout1 // k)
    out2 = out[:, :, Cout1:].reshape(B, H * W * k, Cout2 // k)
    return [out1, out2]


def out_conv_ref(x, w1, b1, w2, b2, k):
    """Pure-JAX reference mirroring the PyTorch forward."""
    def conv(xx, ww, bb):
        y = jax.lax.conv_general_dilated(
            xx, ww, window_strides=(1, 1), padding=((1, 1), (1, 1)),
            dimension_numbers=("NCHW", "OIHW", "NCHW"))
        return y + bb[None, :, None, None]

    def flatten(y, kk):
        b, nf, gx, gy = y.shape
        return jnp.transpose(y, (0, 2, 3, 1)).reshape(b, gx * gy * kk, nf // kk)

    return [flatten(conv(x, w1, b1), k), flatten(conv(x, w2, b2), k)]


if __name__ == "__main__":
    # Small shapes consistent with OutConv(k=2, nin=4, bias=-4.0)
    B, Cin, H, W = 2, 4, 16, 16
    k = 2
    bias_init = -4.0
    Cout1, Cout2 = (NCLS + 1) * k, 4 * k

    key = jax.random.PRNGKey(0)
    kx, k1, k2, k3 = jax.random.split(key, 4)

    x = jax.random.normal(kx, (B, Cin, H, W), dtype=jnp.float32)
    w1 = jax.random.normal(k1, (Cout1, Cin, 3, 3), dtype=jnp.float32) * 0.1
    b1 = jnp.full((Cout1,), bias_init, dtype=jnp.float32)  # bias.zero_().add_(bias)
    w2 = jax.random.normal(k2, (Cout2, Cin, 3, 3), dtype=jnp.float32) * 0.1
    b2 = jax.random.normal(k3, (Cout2,), dtype=jnp.float32) * 0.1

    out1, out2 = out_conv(x, w1, b1, w2, b2, k)
    out1 = jax.block_until_ready(out1)
    out2 = jax.block_until_ready(out2)

    ref1, ref2 = out_conv_ref(x, w1, b1, w2, b2, k)
    assert out1.shape == (B, H * W * k, NCLS + 1)
    assert out2.shape == (B, H * W * k, 4)
    assert jnp.allclose(out1, ref1, atol=1e-4, rtol=1e-4), "oconv1 mismatch"
    assert jnp.allclose(out2, ref2, atol=1e-4, rtol=1e-4), "oconv2 mismatch"

    print("KERNEL_OK")
</pallas_src>

<mosaic_0001>
module attributes {stable_mosaic.version = 11 : i64} {
  func.func @_outconv_gemm_kernel(%arg0: i32, %arg1: i32, %arg2: memref<256x36xf32, #tpu.memory_space<vmem>>, %arg3: memref<36x256xf32, #tpu.memory_space<vmem>>, %arg4: memref<1x256xf32, #tpu.memory_space<vmem>>, %arg5: memref<256x256xf32, #tpu.memory_space<vmem>>) attributes {dimension_semantics = [#tpu.dimension_semantics<parallel>, #tpu.dimension_semantics<parallel>], iteration_bounds = array<i64: 2, 4>, scalar_prefetch = 0 : i64, scratch_operands = 0 : i64, tpu.core_type = #tpu.core_type<tc>, window_params = [{transform_indices = @transform_0, window_bounds = array<i64: 256, 36>}, {transform_indices = @transform_1, window_bounds = array<i64: 36, 256>}, {transform_indices = @transform_2, window_bounds = array<i64: 1, 256>}, {transform_indices = @transform_3, window_bounds = array<i64: 256, 256>}]} {
    %c0 = arith.constant 0 : index
    %c0_0 = arith.constant 0 : index
    %0 = vector.load %arg2[%c0, %c0_0] : memref<256x36xf32, #tpu.memory_space<vmem>>, vector<256x36xf32>
    %c0_1 = arith.constant 0 : index
    %c0_2 = arith.constant 0 : index
    %1 = vector.load %arg3[%c0_1, %c0_2] : memref<36x256xf32, #tpu.memory_space<vmem>>, vector<36x256xf32>
    %cst = arith.constant dense<0.000000e+00> : vector<256x256xf32>
    %2 = tpu.matmul %0, %1, %cst {dimension_numbers = #tpu.dot_dimension_numbers<[1], [0], [0], [1], [0, 0, 1, 1], [], []>} : vector<256x36xf32>, vector<36x256xf32>, vector<256x256xf32> -> vector<256x256xf32>
    %c0_3 = arith.constant 0 : index
    %c0_4 = arith.constant 0 : index
    %3 = vector.load %arg4[%c0_3, %c0_4] : memref<1x256xf32, #tpu.memory_space<vmem>>, vector<1x256xf32>
    %4 = vector.broadcast %3 : vector<1x256xf32> to vector<256x256xf32>
    %5 = arith.addf %2, %4 : vector<256x256xf32>
    %c0_5 = arith.constant 0 : index
    %c0_6 = arith.constant 0 : index
    %6 = vector.load %arg5[%c0_5, %c0_6] : memref<256x256xf32, #tpu.memory_space<vmem>>, vector<256x256xf32>
    tpu.vector_store %arg5[%c0_5, %c0_6], %5 {strides = array<i32>} : memref<256x256xf32, #tpu.memory_space<vmem>>, vector<256x256xf32>,
    return
  }
  func.func @transform_0(%arg0: i32, %arg1: i32) -> (i32, i32) {
    %c0_i32 = arith.constant 0 : i32
    %c0_i32_0 = arith.constant 0 : i32
    return %arg0, %c0_i32 : i32, i32
  }
  func.func @transform_1(%arg0: i32, %arg1: i32) -> (i32, i32) {
    %c0_i32 = arith.constant 0 : i32
    %c0_i32_0 = arith.constant 0 : i32
    return %c0_i32, %arg1 : i32, i32
  }
  func.func @transform_2(%arg0: i32, %arg1: i32) -> (i32, i32) {
    %c0_i32 = arith.constant 0 : i32
    %c0_i32_0 = arith.constant 0 : i32
    return %c0_i32, %arg1 : i32, i32
  }
  func.func @transform_3(%arg0: i32, %arg1: i32) -> (i32, i32) {
    %c0_i32 = arith.constant 0 : i32
    return %arg0, %arg1 : i32, i32
  }
}

</mosaic_0001>

<llo_original>
// kernel: tpu_custom_call.1
$region0: #{tpu_custom_call.1}
  #allocation0 [shape = 'u32[]', space=smem, size = 0x4, offset = 0x4, fixed_abs, tag = 'smem constant byte address 0x4 - core index']
  #allocation1 [shape = 'u32[144,128]{1,0:T(1,128)}', space=vmem, size = 0x12000, scoped, tag = 'internal scratch']
  %s0 = inlined_call_operand.vmem [shape: f32[512,36], index: 0, kind: input, shape index: {}]
  %s1 = inlined_call_operand.hbm [shape: f32[36,1024], index: 1, kind: input, shape index: {}]
  %s2 = inlined_call_operand.hbm [shape: f32[1,1024], index: 2, kind: input, shape index: {}]
  %s3 = inlined_call_operand.hbm [shape: f32[512,1024], index: 3, kind: output, shape index: {}]
  %s4 = sld [smem:[#allocation0]]
  $region53: #{tpu_custom_call.1} parent=0
    _
  %s6 = ssub.s32 1, %s4
  %s7 = scalar_select 0, %s6, %s4
  $region1: #{tpu_custom_call.1} parent=0
    #allocation2 [shape = 'u8[81920]{0}', space=vmem, size = 0x14000, scoped, tag = 'input window, operand 1']
    #allocation3 [shape = 's32[2]{0}', space=sflag, size = 0x8, scoped, tag = 'scoped memory for tpu_custom_call.1']
    #allocation4 [shape = 's32[2]{0}', space=sflag, size = 0x8, scoped, tag = 'scoped memory for tpu_custom_call.1']
    #allocation5 [shape = 'u8[2048]{0}', space=vmem, size = 0x800, scoped, tag = 'input window, operand 2']
    #allocation6 [shape = 's32[2]{0}', space=sflag, size = 0x8, scoped, tag = 'scoped memory for tpu_custom_call.1']
    #allocation7 [shape = 'u8[524288]{0}', space=vmem, size = 0x80000, scoped, tag = 'output window, operand 0']
    %8 = vsyncpa [#allocation3], 0
    %s9 = scalar_lea.sflag [#allocation3], 1
    %10 = vsyncpa %s9, 0
    %11 = vsyncpa [#allocation6], 0
    %s12 = scalar_lea.sflag [#allocation6], 1
    %13 = vsyncpa %s12, 0
    %14 = vsyncpa [#allocation4], 0
    %s15 = scalar_lea.sflag [#allocation4], 1
    %16 = vsyncpa %s15, 0
    loop: start=0, step=1, limit=10
    $region2: #{tpu_custom_call.1} parent=1 // loop_pre_header
      _
    $region3: #{tpu_custom_call.1} parent=1 // loop_header
      %s18 = sphi 0, %s22
      %p19 = scmp.ge.s32.totalorder %s18, 10
      %s25 = sphi 0, %s37
      %s26 = sphi 0, %s33
      %s27 = sphi 0, %s25
      %s28 = sphi 0, %s26
      %s29 = sphi 0, %s27
      %s30 = sphi 0, %s28
      %s40 = sphi 0, %s42
      %s43 = sphi 0, %s40
      %s44 = sphi 0, %s43
      %s60 = sphi 0, %s44
      %s66 = sphi 0, %s68
      %s69 = sphi 0, %s66
      %s70 = sphi 0, %s69
      %s86 = sphi 0, %s70
      %s92 = sphi 0, %s94
      %s95 = sphi 0, %s92
      %s96 = sphi 0, %s95
      %s112 = sphi 0, %s96
      %s120 = sphi 0, %s122
      %s123 = sphi 0, %s120
      %s124 = sphi 0, %s123
      %s140 = sphi 0, %s124
    $region4: #{tpu_custom_call.1} parent=1 // loop_header_branch
      %21 = sbr.rel (%p19) target = $region8
    $region5: #{tpu_custom_call.1} parent=1 // loop_body
      %s23 = ssub.s32 %s18, 1
      %s24 = ssub.s32 %s18, 2
      %s31 = sadd.s32 1, %s26
      %p32 = scmp.ge.s32.totalorder %s31, 4
      %s33 = scalar_select %p32, 0, %s31
      %s34 = sadd.s32 1, %s25
      %s35 = scalar_select %p32, %s34, %s25
      %p36 = scmp.ge.s32.totalorder %s35, 2
      %s37 = scalar_select %p36, 0, %s35
      %s38 = ssub.s32 %s25, %s37
      %p39 = scmp.eq.s32.totalorder %s38, 0
      %s41 = sadd.s32 %s40, 1
      %s42 = scalar_select %p39, %s40, %s41
      %p45 = pneg %p39
      %p46 = scmp.eq.s32.totalorder %s18, 7
      %p47 = por %p45, %p46
      %p48 = scmp.ne.s32.totalorder %s40, %s43
      %p49 = scmp.eq.s32.totalorder %s18, 0
      %p50 = por %p48, %p49
      %p51 = scmp.ne.s32.totalorder %s40, %s43
      %p52 = scmp.eq.s32.totalorder %s23, 7
      %p53 = por %p51, %p52
      %p54 = scmp.ne.s32.totalorder %s43, %s44
      %p55 = scmp.eq.s32.totalorder %s23, 0
      %p56 = por %p54, %p55
      %p57 = scmp.ne.s32.totalorder %s43, %s44
      %p58 = scmp.eq.s32.totalorder %s24, 7
      %p59 = por %p57, %p58
      %p61 = scmp.ne.s32.totalorder %s44, %s60
      %p62 = scmp.eq.s32.totalorder %s24, 0
      %p63 = por %p61, %p62
      %s64 = ssub.s32 %s26, %s33
      %p65 = scmp.eq.s32.totalorder %s64, 0
      %s67 = sadd.s32 %s66, 1
      %s68 = scalar_select %p65, %s66, %s67
      %p71 = pneg %p65
      %p72 = scmp.eq.s32.totalorder %s18, 7
      %p73 = por %p71, %p72
      %p74 = scmp.ne.s32.totalorder %s66, %s69
      %p75 = scmp.eq.s32.totalorder %s18, 0
      %p76 = por %p74, %p75
      %p77 = scmp.ne.s32.totalorder %s66, %s69
      %p78 = scmp.eq.s32.totalorder %s23, 7
      %p79 = por %p77, %p78
      %p80 = scmp.ne.s32.totalorder %s69, %s70
      %p81 = scmp.eq.s32.totalorder %s23, 0
      %p82 = por %p80, %p81
      %p83 = scmp.ne.s32.totalorder %s69, %s70
      %p84 = scmp.eq.s32.totalorder %s24, 7
      %p85 = por %p83, %p84
      %p87 = scmp.ne.s32.totalorder %s70, %s86
      %p88 = scmp.eq.s32.totalorder %s24, 0
      %p89 = por %p87, %p88
      %s90 = ssub.s32 %s26, %s33
      %p91 = scmp.eq.s32.totalorder %s90, 0
      %s93 = sadd.s32 %s92, 1
      %s94 = scalar_select %p91, %s92, %s93
      %p97 = pneg %p91
      %p98 = scmp.eq.s32.totalorder %s18, 7
      %p99 = por %p97, %p98
      %p100 = scmp.ne.s32.totalorder %s92, %s95
      %p101 = scmp.eq.s32.totalorder %s18, 0
      %p102 = por %p100, %p101
      %p103 = scmp.ne.s32.totalorder %s92, %s95
      %p104 = scmp.eq.s32.totalorder %s23, 7
      %p105 = por %p103, %p104
      %p106 = scmp.ne.s32.totalorder %s95, %s96
      %p107 = scmp.eq.s32.totalorder %s23, 0
      %p108 = por %p106, %p107
      %p109 = scmp.ne.s32.totalorder %s95, %s96
      %p110 = scmp.eq.s32.totalorder %s24, 7
      %p111 = por %p109, %p110
      %p113 = scmp.ne.s32.totalorder %s96, %s112
      %p114 = scmp.eq.s32.totalorder %s24, 0
      %p115 = por %p113, %p114
      %s116 = ssub.s32 %s25, %s37
      %s117 = ssub.s32 %s26, %s33
      %s118 = sor.u32 %s116, %s117
      %p119 = scmp.eq.s32.totalorder %s118, 0
      %s121 = sadd.s32 %s120, 1
      %s122 = scalar_select %p119, %s120, %s121
      %p125 = pneg %p119
      %p126 = scmp.eq.s32.totalorder %s18, 7
      %p127 = por %p125, %p126
      %p128 = scmp.ne.s32.totalorder %s120, %s123
      %p129 = scmp.eq.s32.totalorder %s18, 0
      %p130 = por %p128, %p129
      %p131 = scmp.ne.s32.totalorder %s120, %s123
      %p132 = scmp.eq.s32.totalorder %s23, 7
      %p133 = por %p131, %p132
      %p134 = scmp.ne.s32.totalorder %s123, %s124
      %p135 = scmp.eq.s32.totalorder %s23, 0
      %p136 = por %p134, %p135
      %p137 = scmp.ne.s32.totalorder %s123, %s124
      %p138 = scmp.eq.s32.totalorder %s24, 7
      %p139 = por %p137, %p138
      %p141 = scmp.ne.s32.totalorder %s124, %s140
      %p142 = scmp.eq.s32.totalorder %s24, 0
      %p143 = por %p141, %p142
      %p144 = scmp.le.s32.totalorder 1, %s18
      %p145 = scmp.lt.s32.totalorder %s18, 9
      %p146 = pnand %p144, %p145
      %p147 = pneg %p146
      // Predicated region
      $region9: #{tpu_custom_call.1} parent=5 // pred_check
        _
      $region10: #{tpu_custom_call.1} parent=5 // pred_check_branch
        %149 = sbr.rel (%p146) target = $region12
      $region11: #{tpu_custom_call.1} parent=5 // pred_region
        %s150 = ssub.s32 %s18, 1
      $region12: #{tpu_custom_call.1} parent=5 // pred_fallthru
        _
      %p151 = scmp.lt.s32.totalorder %s18, 8
      // Predicated region
      $region13: #{tpu_custom_call.1} parent=5 // pred_check
        %p152 = pneg %p151
      $region14: #{tpu_custom_call.1} parent=5 // pred_check_branch
        %154 = sbr.rel (%p152) target = $region16
      $region15: #{tpu_custom_call.1} parent=5 // pred_region
        // Predicated region
        $region17: #{tpu_custom_call.1} parent=15 // pred_check
          %p155 = pneg %p50
        $region18: #{tpu_custom_call.1} parent=15 // pred_check_branch
          %157 = sbr.rel (%p155) target = $region20
        $region19: #{tpu_custom_call.1} parent=15 // pred_region
          %s158 = smul.u32 32, %s25
          %p159 = scmp.lt.s32.totalorder %s158, 63
          %s160 = scalar_select %p159, %s158, 63
          %s161 = smul.addr %s160, 8
          %s162 = scalar_lea.vmem %s0, %s161
          %s163 = smul.u32 32, %s25
        $region20: #{tpu_custom_call.1} parent=15 // pred_fallthru
          _
        // Predicated region
        $region21: #{tpu_custom_call.1} parent=15 // pred_check
          %p164 = pneg %p76
        $region22: #{tpu_custom_call.1} parent=15 // pred_check_branch
          %166 = sbr.rel (%p164) target = $region24
        $region23: #{tpu_custom_call.1} parent=15 // pred_region
          %s167 = sand.u32 %s66, 1
          %s168 = scalar_lea.sflag [#allocation3], %s167
          %s169 = sand.u32 %s66, 1
          %s170 = smul.addr %s169, 80
          %s171 = scalar_lea.vmem [#allocation2], %s170
          %s172 = smul.u32 2, %s26
          %s174 = ssub.s32 1280, 1280
          %175 = vsyncadd %s168, %s174
          %s176 = smul.addr %s172, 128
          %s177 = scalar_lea.hbm %s1, %s176
          %s178 = sshll.u32 %s171, 4
          %s179 = int_to_ptr.vmem [resolvable:$true] %s178
          %184 = dma.hbm_to_vmem [thread:$0]  %s177, 1280, %s179, %s168, 1024, 256, 16
        $region24: #{tpu_custom_call.1} parent=15 // pred_fallthru
          _
        // Predicated region
        $region25: #{tpu_custom_call.1} parent=15 // pred_check
          %p185 = pneg %p102
        $region26: #{tpu_custom_call.1} parent=15 // pred_check_branch
          %187 = sbr.rel (%p185) target = $region28
        $region27: #{tpu_custom_call.1} parent=15 // pred_region
          %s188 = sand.u32 %s92, 1
          %s189 = scalar_lea.sflag [#allocation6], %s188
          %s190 = sand.u32 %s92, 1
          %s191 = smul.addr %s190, 2
          %s192 = scalar_lea.vmem [#allocation5], %s191
          %s193 = smul.u32 2, %s26
          %s195 = ssub.s32 32, 32
          %196 = vsyncadd %s189, %s195
          %s197 = smul.addr %s193, 16
          %s198 = scalar_lea.hbm %s2, %s197
          %s200 = sshll.u32 %s192, 4
          %s201 = int_to_ptr.vmem [resolvable:$true] %s200
          %203 = dma.hbm_to_vmem [thread:$0]  %s198, 32, %s201, %s189
        $region28: #{tpu_custom_call.1} parent=15 // pred_fallthru
          _
      $region16: #{tpu_custom_call.1} parent=5 // pred_fallthru
        _
      %p204 = scmp.le.s32.totalorder 1, %s18
      %p205 = scmp.lt.s32.totalorder %s18, 9
      %p206 = pnand %p204, %p205
      %p207 = pneg %p206
      // Predicated region
      $region29: #{tpu_custom_call.1} parent=5 // pred_check
        _
      $region30: #{tpu_custom_call.1} parent=5 // pred_check_branch
        %209 = sbr.rel (%p206) target = $region32
      $region31: #{tpu_custom_call.1} parent=5 // pred_region
        %s210 = ssub.s32 %s18, 1
        %s211 = sand.u32 %s69, 1
        %s212 = scalar_lea.sflag [#allocation3], %s211
        %s213 = sand.u32 %s69, 1
        %s214 = smul.addr %s213, 80
        %s215 = scalar_lea.vmem [#allocation2], %s214
        // Predicated region
        $region33: #{tpu_custom_call.1} parent=31 // pred_check
          %p216 = pneg %p82
        $region34: #{tpu_custom_call.1} parent=31 // pred_check_branch
          %218 = sbr.rel (%p216) target = $region36
        $region35: #{tpu_custom_call.1} parent=31 // pred_region
          %219 = dma.done %s212, 1280
        $region36: #{tpu_custom_call.1} parent=31 // pred_fallthru
          _
        %s220 = sand.u32 %s95, 1
        %s221 = scalar_lea.sflag [#allocation6], %s220
        %s222 = sand.u32 %s95, 1
        %s223 = smul.addr %s222, 2
        %s224 = scalar_lea.vmem [#allocation5], %s223
        // Predicated region
        $region37: #{tpu_custom_call.1} parent=31 // pred_check
          %p225 = pneg %p108
        $region38: #{tpu_custom_call.1} parent=31 // pred_check_branch
          %227 = sbr.rel (%p225) target = $region40
        $region39: #{tpu_custom_call.1} parent=31 // pred_region
          %228 = dma.done %s221, 32
        $region40: #{tpu_custom_call.1} parent=31 // pred_fallthru
          _
        %s229 = smul.u32 32, %s27
        %p230 = scmp.lt.s32.totalorder %s229, 63
        %s231 = scalar_select %p230, %s229, 63
        %s232 = smul.addr %s231, 8
        %s233 = scalar_lea.vmem %s0, %s232
        %p234 = pneg %p56
        %p235 = pneg %p53
        %s236 = sand.u32 %s69, 1
        %s237 = scalar_lea.sflag [#allocation3], %s236
        %s238 = sand.u32 %s69, 1
        %s239 = smul.addr %s238, 80
        %s240 = scalar_lea.vmem [#allocation2], %s239
        %p241 = pneg %p82
        %p242 = pneg %p79
        %s243 = sand.u32 %s95, 1
        %s244 = scalar_lea.sflag [#allocation6], %s243
        %s245 = sand.u32 %s95, 1
        %s246 = smul.addr %s245, 2
        %s247 = scalar_lea.vmem [#allocation5], %s246
        %p248 = pneg %p108
        %p249 = pneg %p105
        %p250 = pneg %p136
        %p251 = pneg %p133
        %s252 = sand.u32 %s123, 1
        %s253 = scalar_lea.sflag [#allocation4], %s252
        %s254 = sand.u32 %s123, 1
        %s255 = smul.addr %s254, 512
        %s256 = scalar_lea.vmem [#allocation7], %s255
        %s257 = smul.u32 32, %s27
        %p258 = scmp.lt.s32.totalorder %s257, 63
        %s259 = scalar_select %p258, %s257, 63
        %s260 = smul.addr %s259, 8
        %s261 = scalar_lea.vmem %s0, %s260
        %s262 = smul.u32 32, %s27
        %s263 = smul.u32 2, %s28
        %s264 = smul.u32 2, %s28
        %s265 = smul.u32 32, %s27
        %s266 = smul.u32 2, %s28
        %v267 = vld [vmem:[%s261] sm:$0xff]
        %v268 = vld [vmem:[%s261 + $0x8] sm:$0xff]
        %v269 = vld [vmem:[%s261 + $0x10] sm:$0xff]
        %v270 = vld [vmem:[%s261 + $0x18] sm:$0xff]
        %v271 = vld [vmem:[%s261 + $0x20] sm:$0xff]
        %v272 = vld [vmem:[%s261 + $0x28] sm:$0xff]
        %v273 = vld [vmem:[%s261 + $0x30] sm:$0xff]
        %v274 = vld [vmem:[%s261 + $0x38] sm:$0xff]
        %v275 = vld [vmem:[%s261 + $0x40] sm:$0xff]
        %v276 = vld [vmem:[%s261 + $0x48] sm:$0xff]
        %v277 = vld [vmem:[%s261 + $0x50] sm:$0xff]
        %v278 = vld [vmem:[%s261 + $0x58] sm:$0xff]
        %v279 = vld [vmem:[%s261 + $0x60] sm:$0xff]
        %v280 = vld [vmem:[%s261 + $0x68] sm:$0xff]
        %v281 = vld [vmem:[%s261 + $0x70] sm:$0xff]
        %v282 = vld [vmem:[%s261 + $0x78] sm:$0xff]
        %v283 = vld [vmem:[%s261 + $0x80] sm:$0xff]
        %v284 = vld [vmem:[%s261 + $0x88] sm:$0xff]
        %v285 = vld [vmem:[%s261 + $0x90] sm:$0xff]
        %v286 = vld [vmem:[%s261 + $0x98] sm:$0xff]
        %v287 = vld [vmem:[%s261 + $0xa0] sm:$0xff]
        %v288 = vld [vmem:[%s261 + $0xa8] sm:$0xff]
        %v289 = vld [vmem:[%s261 + $0xb0] sm:$0xff]
        %v290 = vld [vmem:[%s261 + $0xb8] sm:$0xff]
        %v291 = vld [vmem:[%s261 + $0xc0] sm:$0xff]
        %v292 = vld [vmem:[%s261 + $0xc8] sm:$0xff]
        %v293 = vld [vmem:[%s261 + $0xd0] sm:$0xff]
        %v294 = vld [vmem:[%s261 + $0xd8] sm:$0xff]
        %v295 = vld [vmem:[%s261 + $0xe0] sm:$0xff]
        %v296 = vld [vmem:[%s261 + $0xe8] sm:$0xff]
        %v297 = vld [vmem:[%s261 + $0xf0] sm:$0xff]
        %v298 = vld [vmem:[%s261 + $0xf8] sm:$0xff]
        %v299 = vld [vmem:[%s215] sm:$0xff]
        %v300 = vld [vmem:[%s215 + $0x8] sm:$0xff]
        %v301 = vld [vmem:[%s215 + $0x10] sm:$0xff]
        %v302 = vld [vmem:[%s215 + $0x18] sm:$0xff]
        %v303 = vld [vmem:[%s215 + $0x20] sm:$0xff]
        %v304 = vld [vmem:[%s215 + $0x28] sm:$0xff]
        %v305 = vld [vmem:[%s215 + $0x30] sm:$0xff]
        %v306 = vld [vmem:[%s215 + $0x38] sm:$0xff]
        %v307 = vld [vmem:[%s215 + $0x40] sm:$0xf]
        %v308 = vld [vmem:[%s215 + $0x48] sm:$0xf]
        %v309 = vld [vmem:[%s224] sm:$0x3]
        %v311 = vlaneseq
        %v312 = vshrl.u32 %v311, 7
        %v313 = vsub.s32 0, %v312
        %v314 = vrot.slane %v309, %v313
        %v315 = vlaneseq
        %v316 = vshrl.u32 %v315, 7
        %v317 = vsub.s32 1, %v316
        %v318 = vrot.slane %v309, %v317
        %vm321 = vcmask 293888
        %v323 = vsel %vm321, %v267, 0
        %v326 = vsel %vm321, %v268, 0
        %v329 = vsel %vm321, %v269, 0
        %v332 = vsel %vm321, %v270, 0
        %v335 = vsel %vm321, %v271, 0
        %v338 = vsel %vm321, %v272, 0
        %v341 = vsel %vm321, %v273, 0
        %v344 = vsel %vm321, %v274, 0
        %v347 = vsel %vm321, %v275, 0
        %v350 = vsel %vm321, %v276, 0
        %v353 = vsel %vm321, %v277, 0
        %v356 = vsel %vm321, %v278, 0
        %v359 = vsel %vm321, %v279, 0
        %v362 = vsel %vm321, %v280, 0
        %v365 = vsel %vm321, %v281, 0
        %v368 = vsel %vm321, %v282, 0
        %v371 = vsel %vm321, %v283, 0
        %v374 = vsel %vm321, %v284, 0
        %v377 = vsel %vm321, %v285, 0
        %v380 = vsel %vm321, %v286, 0
        %v383 = vsel %vm321, %v287, 0
        %v386 = vsel %vm321, %v288, 0
        %v389 = vsel %vm321, %v289, 0
        %v392 = vsel %vm321, %v290, 0
        %v395 = vsel %vm321, %v291, 0
        %v398 = vsel %vm321, %v292, 0
        %v401 = vsel %vm321, %v293, 0
        %v404 = vsel %vm321, %v294, 0
        %v407 = vsel %vm321, %v295, 0
        %v410 = vsel %vm321, %v296, 0
        %v413 = vsel %vm321, %v297, 0
        %v416 = vsel %vm321, %v298, 0
        %vm418 = vcmask 1043456
        %v420 = vsel %vm418, %v307, 0
        %v423 = vsel %vm418, %v308, 0
        %425 = vmatprep.subr.mxu0 %v300
        %426 = vmatpush1.msra.mxu0 %v299
        %427 = vmatprep.subr.mxu0 %v302
        %428 = vmatpush1.msra.mxu0 %v301
        %429 = vmatprep.subr.mxu0 %v304
        %430 = vmatpush1.msra.mxu0 %v303
        %431 = vmatprep.subr.mxu0 %v306
        %432 = vmatpush1.msra.mxu0 %v305
        %433 = vmatprep.subr.mxu0 %v423
        %434 = vmatpush1.msra.mxu0 %v420
        %435 = vmatprep.subr.mxu0 0.0
        %436 = vmatpush1.msra.mxu0 0.0
        %437 = vmatprep.subr.mxu0 0.0
        %438 = vmatpush1.msra.mxu0 0.0
        %439 = vmatprep.subr.mxu0 0.0
        %440 = vmatpush1.msra.mxu0 0.0
        %441 = vmatprep.subr.mxu0 0.0
        %442 = vmatpush1.msra.mxu0 0.0
        %443 = vmatprep.subr.mxu0 0.0
        %444 = vmatpush1.msra.mxu0 0.0
        %445 = vmatprep.subr.mxu0 0.0
        %446 = vmatpush1.msra.mxu0 0.0
        %447 = vmatprep.subr.mxu0 0.0
        %448 = vmatpush1.msra.mxu0 0.0
        %449 = vmatprep.subr.mxu0 0.0
        %450 = vmatpush1.msra.mxu0 0.0
        %451 = vmatprep.subr.mxu0 0.0
        %452 = vmatpush1.msra.mxu0 0.0
        %453 = vmatprep.subr.mxu0 0.0
        %454 = vmatpush1.msra.mxu0 0.0
        %455 = vmatprep.subr.mxu0 0.0
        %456 = vmatpush1.msra.mxu0 0.0
        %457 = vmatprep.subr.mxu0 0.0
        %458 = vmatpush1.msra.mxu0 0.0
        %459 = vmatprep.subr.mxu0 0.0
        %460 = vmatpush1.msra.mxu0 0.0
        %461 = vmatprep.subr.mxu0 0.0
        %462 = vmatpush1.msra.mxu0 0.0
        %463 = vmatprep.subr.mxu0 0.0
        %464 = vmatpush1.msra.mxu0 0.0
        %465 = vmatprep.subr.mxu0 0.0
        %466 = vmatpush1.msra.mxu0 0.0
        %467 = vmatprep.subr.mxu0 0.0
        %468 = vmatpush1.msra.mxu0 0.0
        %469 = vmatprep.subr.mxu0 0.0
        %470 = vmatpush1.msra.mxu0 0.0
        %471 = vmatprep.subr.mxu0 0.0
        %472 = vmatpush1.msra.mxu0 0.0
        %473 = vmatprep.subr.mxu0 0.0
        %474 = vmatpush1.msra.mxu0 0.0
        %475 = vmatprep.subr.mxu0 0.0
        %476 = vmatpush1.msra.mxu0 0.0
        %477 = vmatprep.subr.mxu0 0.0
        %478 = vmatpush1.msra.mxu0 0.0
        %479 = vmatprep.subr.mxu0 0.0
        %480 = vmatpush1.msra.mxu0 0.0
        %481 = vmatprep.subr.mxu0 0.0
        %482 = vmatpush1.msra.mxu0 0.0
        %483 = vmatprep.subr.mxu0 0.0
        %484 = vmatpush1.msra.mxu0 0.0
        %485 = vmatprep.subr.mxu0 0.0
        %486 = vmatpush1.msra.mxu0 0.0
        %487 = vmatprep.subr.mxu0 0.0
        %488 = vmatpush1.msra.mxu0 0.0
        %489 = vmatprep.mubr.f32.mxu0 0.0
        %490 = vmatmul.mubr.f32.gmra.mrb[0].mxu0 %v323
        %v491 = vpop.f32.mrb[0].mxu0
        %v492 = vadd.f32 %v314, %v491
        %v493 = vpop.f32.mrb[0].mxu0
        %v494 = vadd.f32 %v318, %v493
        %495 = vmatprep.mubr.f32.mxu0 0.0
        %496 = vmatmul.mubr.f32.gmra.mrb[0].mxu0 %v326
        %v497 = vpop.f32.mrb[0].mxu0
        %v498 = vadd.f32 %v314, %v497
        %v499 = vpop.f32.mrb[0].mxu0
        %v500 = vadd.f32 %v318, %v499
        %501 = vmatprep.mubr.f32.mxu0 0.0
        %502 = vmatmul.mubr.f32.gmra.mrb[0].mxu0 %v329
        %v503 = vpop.f32.mrb[0].mxu0
        %v504 = vadd.f32 %v314, %v503
        %v505 = vpop.f32.mrb[0].mxu0
        %v506 = vadd.f32 %v318, %v505
        %507 = vmatprep.mubr.f32.mxu0 0.0
        %508 = vmatmul.mubr.f32.gmra.mrb[0].mxu0 %v332
        %v509 = vpop.f32.mrb[0].mxu0
        %v510 = vadd.f32 %v314, %v509
        %v511 = vpop.f32.mrb[0].mxu0
        %v512 = vadd.f32 %v318, %v511
        %513 = vmatprep.mubr.f32.mxu0 0.0
        %514 = vmatmul.mubr.f32.gmra.mrb[0].mxu0 %v335
        %v515 = vpop.f32.mrb[0].mxu0
        %v516 = vadd.f32 %v314, %v515
        %v517 = vpop.f32.mrb[0].mxu0
        %v518 = vadd.f32 %v318, %v517
        %519 = vmatprep.mubr.f32.mxu0 0.0
        %520 = vmatmul.mubr.f32.gmra.mrb[0].mxu0 %v338
        %v521 = vpop.f32.mrb[0].mxu0
        %v522 = vadd.f32 %v314, %v521
        %v523 = vpop.f32.mrb[0].mxu0
        %v524 = vadd.f32 %v318, %v523
        %525 = vmatprep.mubr.f32.mxu0 0.0
        %526 = vmatmul.mubr.f32.gmra.mrb[0].mxu0 %v341
        %v527 = vpop.f32.mrb[0].mxu0
        %v528 = vadd.f32 %v314, %v527
        %v529 = vpop.f32.mrb[0].mxu0
        %v530 = vadd.f32 %v318, %v529
        %531 = vmatprep.mubr.f32.mxu0 0.0
        %532 = vmatmul.mubr.f32.gmra.mrb[0].mxu0 %v344
        %v533 = vpop.f32.mrb[0].mxu0
        %v534 = vadd.f32 %v314, %v533
        %v535 = vpop.f32.mrb[0].mxu0
        %v536 = vadd.f32 %v318, %v535
        %537 = vmatprep.mubr.f32.mxu0 0.0
        %538 = vmatmul.mubr.f32.gmra.mrb[0].mxu0 %v347
        %v539 = vpop.f32.mrb[0].mxu0
        %v540 = vadd.f32 %v314, %v539
        %v541 = vpop.f32.mrb[0].mxu0
        %v542 = vadd.f32 %v318, %v541
        %543 = vmatprep.mubr.f32.mxu0 0.0
        %544 = vmatmul.mubr.f32.gmra.mrb[0].mxu0 %v350
        %v545 = vpop.f32.mrb[0].mxu0
        %v546 = vadd.f32 %v314, %v545
        %v547 = vpop.f32.mrb[0].mxu0
        %v548 = vadd.f32 %v318, %v547
        %549 = vmatprep.mubr.f32.mxu0 0.0
        %550 = vmatmul.mubr.f32.gmra.mrb[0].mxu0 %v353
        %v551 = vpop.f32.mrb[0].mxu0
        %v552 = vadd.f32 %v314, %v551
        %v553 = vpop.f32.mrb[0].mxu0
        %v554 = vadd.f32 %v318, %v553
        %555 = vmatprep.mubr.f32.mxu0 0.0
        %556 = vmatmul.mubr.f32.gmra.mrb[0].mxu0 %v356
        %v557 = vpop.f32.mrb[0].mxu0
        %v558 = vadd.f32 %v314, %v557
        %v559 = vpop.f32.mrb[0].mxu0
        %v560 = vadd.f32 %v318, %v559
        %561 = vmatprep.mubr.f32.mxu0 0.0
        %562 = vmatmul.mubr.f32.gmra.mrb[0].mxu0 %v359
        %v563 = vpop.f32.mrb[0].mxu0
        %v564 = vadd.f32 %v314, %v563
        %v565 = vpop.f32.mrb[0].mxu0
        %v566 = vadd.f32 %v318, %v565
        %567 = vmatprep.mubr.f32.mxu0 0.0
        %568 = vmatmul.mubr.f32.gmra.mrb[0].mxu0 %v362
        %v569 = vpop.f32.mrb[0].mxu0
        %v570 = vadd.f32 %v314, %v569
        %v571 = vpop.f32.mrb[0].mxu0
        %v572 = vadd.f32 %v318, %v571
        %573 = vmatprep.mubr.f32.mxu0 0.0
        %574 = vmatmul.mubr.f32.gmra.mrb[0].mxu0 %v365
        %v575 = vpop.f32.mrb[0].mxu0
        %v576 = vadd.f32 %v314, %v575
        %v577 = vpop.f32.mrb[0].mxu0
        %v578 = vadd.f32 %v318, %v577
        %579 = vmatprep.mubr.f32.mxu0 0.0
        %580 = vmatmul.mubr.f32.gmra.mrb[0].mxu0 %v368
        %v581 = vpop.f32.mrb[0].mxu0
        %v582 = vadd.f32 %v314, %v581
        %v583 = vpop.f32.mrb[0].mxu0
        %v584 = vadd.f32 %v318, %v583
        %585 = vmatprep.mubr.f32.mxu0 0.0
        %586 = vmatmul.mubr.f32.gmra.mrb[0].mxu0 %v371
        %v587 = vpop.f32.mrb[0].mxu0
        %v588 = vadd.f32 %v314, %v587
        %v589 = vpop.f32.mrb[0].mxu0
        %v590 = vadd.f32 %v318, %v589
        %591 = vmatprep.mubr.f32.mxu0 0.0
        %592 = vmatmul.mubr.f32.gmra.mrb[0].mxu0 %v374
        %v593 = vpop.f32.mrb[0].mxu0
        %v594 = vadd.f32 %v314, %v593
        %v595 = vpop.f32.mrb[0].mxu0
        %v596 = vadd.f32 %v318, %v595
        %597 = vmatprep.mubr.f32.mxu0 0.0
        %598 = vmatmul.mubr.f32.gmra.mrb[0].mxu0 %v377
        %v599 = vpop.f32.mrb[0].mxu0
        %v600 = vadd.f32 %v314, %v599
        %v601 = vpop.f32.mrb[0].mxu0
        %v602 = vadd.f32 %v318, %v601
        %603 = vmatprep.mubr.f32.mxu0 0.0
        %604 = vmatmul.mubr.f32.gmra.mrb[0].mxu0 %v380
        %v605 = vpop.f32.mrb[0].mxu0
        %v606 = vadd.f32 %v314, %v605
        %v607 = vpop.f32.mrb[0].mxu0
        %v608 = vadd.f32 %v318, %v607
        %609 = vmatprep.mubr.f32.mxu0 0.0
        %610 = vmatmul.mubr.f32.gmra.mrb[0].mxu0 %v383
        %v611 = vpop.f32.mrb[0].mxu0
        %v612 = vadd.f32 %v314, %v611
        %v613 = vpop.f32.mrb[0].mxu0
        %v614 = vadd.f32 %v318, %v613
        %615 = vmatprep.mubr.f32.mxu0 0.0
        %616 = vmatmul.mubr.f32.gmra.mrb[0].mxu0 %v386
        %v617 = vpop.f32.mrb[0].mxu0
        %v618 = vadd.f32 %v314, %v617
        %v619 = vpop.f32.mrb[0].mxu0
        %v620 = vadd.f32 %v318, %v619
        %621 = vmatprep.mubr.f32.mxu0 0.0
        %622 = vmatmul.mubr.f32.gmra.mrb[0].mxu0 %v389
        %v623 = vpop.f32.mrb[0].mxu0
        %v624 = vadd.f32 %v314, %v623
        %v625 = vpop.f32.mrb[0].mxu0
        %v626 = vadd.f32 %v318, %v625
        %627 = vmatprep.mubr.f32.mxu0 0.0
        %628 = vmatmul.mubr.f32.gmra.mrb[0].mxu0 %v392
        %v629 = vpop.f32.mrb[0].mxu0
        %v630 = vadd.f32 %v314, %v629
        %v631 = vpop.f32.mrb[0].mxu0
        %v632 = vadd.f32 %v318, %v631
        %633 = vmatprep.mubr.f32.mxu0 0.0
        %634 = vmatmul.mubr.f32.gmra.mrb[0].mxu0 %v395
        %v635 = vpop.f32.mrb[0].mxu0
        %v636 = vadd.f32 %v314, %v635
        %v637 = vpop.f32.mrb[0].mxu0
        %v638 = vadd.f32 %v318, %v637
        %639 = vmatprep.mubr.f32.mxu0 0.0
        %640 = vmatmul.mubr.f32.gmra.mrb[0].mxu0 %v398
        %v641 = vpop.f32.mrb[0].mxu0
        %v642 = vadd.f32 %v314, %v641
        %v643 = vpop.f32.mrb[0].mxu0
        %v644 = vadd.f32 %v318, %v643
        %645 = vmatprep.mubr.f32.mxu0 0.0
        %646 = vmatmul.mubr.f32.gmra.mrb[0].mxu0 %v401
        %v647 = vpop.f32.mrb[0].mxu0
        %v648 = vadd.f32 %v314, %v647
        %v649 = vpop.f32.mrb[0].mxu0
        %v650 = vadd.f32 %v318, %v649
        %651 = vmatprep.mubr.f32.mxu0 0.0
        %652 = vmatmul.mubr.f32.gmra.mrb[0].mxu0 %v404
        %v653 = vpop.f32.mrb[0].mxu0
        %v654 = vadd.f32 %v314, %v653
        %v655 = vpop.f32.mrb[0].mxu0
        %v656 = vadd.f32 %v318, %v655
        %657 = vmatprep.mubr.f32.mxu0 0.0
        %658 = vmatmul.mubr.f32.gmra.mrb[0].mxu0 %v407
        %v659 = vpop.f32.mrb[0].mxu0
        %v660 = vadd.f32 %v314, %v659
        %v661 = vpop.f32.mrb[0].mxu0
        %v662 = vadd.f32 %v318, %v661
        %663 = vmatprep.mubr.f32.mxu0 0.0
        %664 = vmatmul.mubr.f32.gmra.mrb[0].mxu0 %v410
        %v665 = vpop.f32.mrb[0].mxu0
        %v666 = vadd.f32 %v314, %v665
        %v667 = vpop.f32.mrb[0].mxu0
        %v668 = vadd.f32 %v318, %v667
        %669 = vmatprep.mubr.f32.mxu0 0.0
        %670 = vmatmul.mubr.f32.gmra.mrb[0].mxu0 %v413
        %v671 = vpop.f32.mrb[0].mxu0
        %v672 = vadd.f32 %v314, %v671
        %v673 = vpop.f32.mrb[0].mxu0
        %v674 = vadd.f32 %v318, %v673
        %675 = vmatprep.mubr.f32.mxu0 0.0
        %676 = vmatmul.mubr.f32.gmra.mrb[0].mxu0 %v416
        %v677 = vpop.f32.mrb[0].mxu0
        %v678 = vadd.f32 %v314, %v677
        %v679 = vpop.f32.mrb[0].mxu0
        %v680 = vadd.f32 %v318, %v679
        %681 = vdwg.mxu0
        %682 = vst [vmem:[%s256] sm:$0xff] %v492
        %683 = vst [vmem:[%s256 + $0x8] sm:$0xff] %v494
        %684 = vst [vmem:[%s256 + $0x10] sm:$0xff] %v498
        %685 = vst [vmem:[%s256 + $0x18] sm:$0xff] %v500
        %686 = vst [vmem:[%s256 + $0x20] sm:$0xff] %v504
        %687 = vst [vmem:[%s256 + $0x28] sm:$0xff] %v506
        %688 = vst [vmem:[%s256 + $0x30] sm:$0xff] %v510
        %689 = vst [vmem:[%s256 + $0x38] sm:$0xff] %v512
        %690 = vst [vmem:[%s256 + $0x40] sm:$0xff] %v516
        %691 = vst [vmem:[%s256 + $0x48] sm:$0xff] %v518
        %692 = vst [vmem:[%s256 + $0x50] sm:$0xff] %v522
        %693 = vst [vmem:[%s256 + $0x58] sm:$0xff] %v524
        %694 = vst [vmem:[%s256 + $0x60] sm:$0xff] %v528
        %695 = vst [vmem:[%s256 + $0x68] sm:$0xff] %v530
        %696 = vst [vmem:[%s256 + $0x70] sm:$0xff] %v534
        %697 = vst [vmem:[%s256 + $0x78] sm:$0xff] %v536
        %698 = vst [vmem:[%s256 + $0x80] sm:$0xff] %v540
        %699 = vst [vmem:[%s256 + $0x88] sm:$0xff] %v542
        %700 = vst [vmem:[%s256 + $0x90] sm:$0xff] %v546
        %701 = vst [vmem:[%s256 + $0x98] sm:$0xff] %v548
        %702 = vst [vmem:[%s256 + $0xa0] sm:$0xff] %v552
        %703 = vst [vmem:[%s256 + $0xa8] sm:$0xff] %v554
        %704 = vst [vmem:[%s256 + $0xb0] sm:$0xff] %v558
        %705 = vst [vmem:[%s256 + $0xb8] sm:$0xff] %v560
        %706 = vst [vmem:[%s256 + $0xc0] sm:$0xff] %v564
        %707 = vst [vmem:[%s256 + $0xc8] sm:$0xff] %v566
        %708 = vst [vmem:[%s256 + $0xd0] sm:$0xff] %v570
        %709 = vst [vmem:[%s256 + $0xd8] sm:$0xff] %v572
        %710 = vst [vmem:[%s256 + $0xe0] sm:$0xff] %v576
        %711 = vst [vmem:[%s256 + $0xe8] sm:$0xff] %v578
        %712 = vst [vmem:[%s256 + $0xf0] sm:$0xff] %v582
        %713 = vst [vmem:[%s256 + $0xf8] sm:$0xff] %v584
        %714 = vst [vmem:[%s256 + $0x100] sm:$0xff] %v588
        %715 = vst [vmem:[%s256 + $0x108] sm:$0xff] %v590
        %716 = vst [vmem:[%s256 + $0x110] sm:$0xff] %v594
        %717 = vst [vmem:[%s256 + $0x118] sm:$0xff] %v596
        %718 = vst [vmem:[%s256 + $0x120] sm:$0xff] %v600
        %719 = vst [vmem:[%s256 + $0x128] sm:$0xff] %v602
        %720 = vst [vmem:[%s256 + $0x130] sm:$0xff] %v606
        %721 = vst [vmem:[%s256 + $0x138] sm:$0xff] %v608
        %722 = vst [vmem:[%s256 + $0x140] sm:$0xff] %v612
        %723 = vst [vmem:[%s256 + $0x148] sm:$0xff] %v614
        %724 = vst [vmem:[%s256 + $0x150] sm:$0xff] %v618
        %725 = vst [vmem:[%s256 + $0x158] sm:$0xff] %v620
        %726 = vst [vmem:[%s256 + $0x160] sm:$0xff] %v624
        %727 = vst [vmem:[%s256 + $0x168] sm:$0xff] %v626
        %728 = vst [vmem:[%s256 + $0x170] sm:$0xff] %v630
        %729 = vst [vmem:[%s256 + $0x178] sm:$0xff] %v632
        %730 = vst [vmem:[%s256 + $0x180] sm:$0xff] %v636
        %731 = vst [vmem:[%s256 + $0x188] sm:$0xff] %v638
        %732 = vst [vmem:[%s256 + $0x190] sm:$0xff] %v642
        %733 = vst [vmem:[%s256 + $0x198] sm:$0xff] %v644
        %734 = vst [vmem:[%s256 + $0x1a0] sm:$0xff] %v648
        %735 = vst [vmem:[%s256 + $0x1a8] sm:$0xff] %v650
        %736 = vst [vmem:[%s256 + $0x1b0] sm:$0xff] %v654
        %737 = vst [vmem:[%s256 + $0x1b8] sm:$0xff] %v656
        %738 = vst [vmem:[%s256 + $0x1c0] sm:$0xff] %v660
        %739 = vst [vmem:[%s256 + $0x1c8] sm:$0xff] %v662
        %740 = vst [vmem:[%s256 + $0x1d0] sm:$0xff] %v666
        %741 = vst [vmem:[%s256 + $0x1d8] sm:$0xff] %v668
        %742 = vst [vmem:[%s256 + $0x1e0] sm:$0xff] %v672
        %743 = vst [vmem:[%s256 + $0x1e8] sm:$0xff] %v674
        %744 = vst [vmem:[%s256 + $0x1f0] sm:$0xff] %v678
        %745 = vst [vmem:[%s256 + $0x1f8] sm:$0xff] %v680
        %s746 = sand.u32 %s123, 1
        %s747 = scalar_lea.sflag [#allocation4], %s746
        %s748 = sand.u32 %s123, 1
        %s749 = smul.addr %s748, 512
        %s750 = scalar_lea.vmem [#allocation7], %s749
        // Predicated region
        $region41: #{tpu_custom_call.1} parent=31 // pred_check
          %p751 = pneg %p133
        $region42: #{tpu_custom_call.1} parent=31 // pred_check_branch
          %753 = sbr.rel (%p751) target = $region44
        $region43: #{tpu_custom_call.1} parent=31 // pred_region
          %s754 = smul.u32 32, %s27
          %s755 = smul.u32 2, %s28
          %s757 = ssub.s32 8192, 8192
          %758 = vsyncadd %s747, %s757
          %s759 = smul.addr %s754, 8
          %s760 = sadd.s32 %s755, %s759
          %s761 = smul.addr %s760, 128
          %s762 = scalar_lea.hbm %s3, %s761
          %s763 = sshll.u32 %s750, 4
          %s764 = int_to_ptr.vmem [resolvable:$true] %s763
          %769 = dma.vmem_to_hbm [thread:$0]  %s764, 8192, %s762, %s747, 256, 1024, 16
        $region44: #{tpu_custom_call.1} parent=31 // pred_fallthru
          _
      $region32: #{tpu_custom_call.1} parent=5 // pred_fallthru
        _
      %p770 = scmp.le.s32.totalorder 2, %s18
      // Predicated region
      $region45: #{tpu_custom_call.1} parent=5 // pred_check
        %p771 = pneg %p770
      $region46: #{tpu_custom_call.1} parent=5 // pred_check_branch
        %773 = sbr.rel (%p771) target = $region48
      $region47: #{tpu_custom_call.1} parent=5 // pred_region
        %s774 = ssub.s32 %s18, 2
        // Predicated region
        $region49: #{tpu_custom_call.1} parent=47 // pred_check
          %p775 = pneg %p139
        $region50: #{tpu_custom_call.1} parent=47 // pred_check_branch
          %777 = sbr.rel (%p775) target = $region52
        $region51: #{tpu_custom_call.1} parent=47 // pred_region
          %s778 = sand.u32 %s124, 1
          %s779 = scalar_lea.sflag [#allocation4], %s778
          %s780 = sand.u32 %s124, 1
          %s781 = smul.addr %s780, 512
          %s782 = scalar_lea.vmem [#allocation7], %s781
          %783 = dma.done %s779, 8192
        $region52: #{tpu_custom_call.1} parent=47 // pred_fallthru
          _
      $region48: #{tpu_custom_call.1} parent=5 // pred_fallthru
        _
    $region6: #{tpu_custom_call.1} parent=1 // loop_footer
      %s22 = sadd.s32 1, %s18
    $region7: #{tpu_custom_call.1} parent=1 // loop_footer_branch
      %17 = sbr.rel target = $region3
    $region8: #{tpu_custom_call.1} parent=1 // loop_exit
      _
    %784 = vsyncpa [#allocation3], 1
    %s785 = scalar_lea.sflag [#allocation3], 1
    %786 = vsyncpa %s785, 1
    %787 = vsyncpa [#allocation6], 1
    %s788 = scalar_lea.sflag [#allocation6], 1
    %789 = vsyncpa %s788, 1
    %790 = vsyncpa [#allocation4], 1
    %s791 = scalar_lea.sflag [#allocation4], 1
    %792 = vsyncpa %s791, 1

</llo_original>
